<compile_context>
chip_gen: v5e
topology: v5e:2x2
jax: 0.10.0
libtpu: 0.0.40
codegen_flags: <defaults>
</compile_context>

<pallas_src>
import jax
import jax.numpy as jnp
from jax.experimental import pallas as pl
from jax.experimental.pallas import tpu as pltpu


def _round_up(n, m):
    return ((n + m - 1) // m) * m


def _mlp_kernel(x_ref,
                w1_ref, b1_ref,
                w2_ref, b2_ref,
                w3_ref, b3_ref,
                w4_ref, b4_ref,
                o_ref):
    # Fully fused forward on one lane-dense batch tile; weights stay VMEM-resident
    # (constant index_map) across grid steps.
    h = x_ref[...]
    h = jnp.maximum(
        jnp.dot(h, w1_ref[...], preferred_element_type=jnp.float32) + b1_ref[...], 0.0)
    h = jnp.maximum(
        jnp.dot(h, w2_ref[...], preferred_element_type=jnp.float32) + b2_ref[...], 0.0)
    h = jnp.maximum(
        jnp.dot(h, w3_ref[...], preferred_element_type=jnp.float32) + b3_ref[...], 0.0)
    h = jnp.dot(h, w4_ref[...], preferred_element_type=jnp.float32) + b4_ref[...]
    o_ref[...] = h.astype(o_ref.dtype)


def _pack_params(params, f_pad, p):
    """Expand per-sample weights into p-way block-diagonal weights (and tiled biases)."""
    packed = {}
    eye = jnp.eye(p, dtype=jnp.float32)
    for li in range(1, 5):
        w = params[f"w{li}"].astype(jnp.float32)
        b = params[f"b{li}"].astype(jnp.float32)
        if li == 1 and w.shape[0] != f_pad:
            # zero-pad the input features to the lane-packing width (no effect on x @ W)
            w = jnp.pad(w, ((0, f_pad - w.shape[0]), (0, 0)))
        packed[f"w{li}"] = jnp.kron(eye, w)          # block-diagonal (p*in, p*out)
        packed[f"b{li}"] = jnp.tile(b, (1, p))       # (1, p*out)
    return packed


def multi_factor_nn_forward(x, params, *, rows_per_tile=512, input_dtype=None,
                            vmem_limit_bytes=32 * 1024 * 1024):
    """MultiFactorNN forward pass via a single fused Pallas TPU kernel.

    x: (B, F) float array.
    params: dict with w1..w4 of shape (in, out) and b1..b4 of shape (1, out).
    rows_per_tile: packed (128-lane) rows per grid step; each packed row holds
        128 // next_pow2(F) samples (8 samples for F=16).
    input_dtype: optional cast for the streamed x (e.g. jnp.bfloat16 to halve HBM
        read traffic on bandwidth-bound v5e); accumulation stays f32.
    """
    B, F = x.shape
    # TODO(synk): factor_num > 128 would need a K-tiled contraction instead of lane packing.
    assert 1 <= F <= 128, "factor_num must be in [1, 128] for lane packing"

    f_pad = 1
    while f_pad < F:
        f_pad *= 2
    p = 128 // f_pad                       # samples packed per lane-dense row

    packed_rows = -(-B // p)
    # Prefer >= 2 grid steps (DMA/compute pipelining + v7x dual-TensorCore sharding)
    # whenever the batch allows it, while keeping each step's tile large.
    max_tile = _round_up(packed_rows, 8)
    if packed_rows >= 16:
        max_tile = _round_up(-(-packed_rows // 2), 8)
    rows_per_tile = max(8, _round_up(min(rows_per_tile, max_tile), 8))
    padded_rows = _round_up(packed_rows, rows_per_tile)
    b_pad = padded_rows * p

    if input_dtype is None:
        input_dtype = x.dtype
    xp = x.astype(input_dtype)
    if (b_pad, f_pad) != (B, F):
        xp = jnp.pad(xp, ((0, b_pad - B), (0, f_pad - F)))
    x_packed = xp.reshape(padded_rows, p * f_pad)   # lane-dense (rows, 128), row-major (free for F==f_pad)

    w = _pack_params(params, f_pad, p)

    full = lambda a: pl.BlockSpec(a.shape, lambda i: (0, 0))
    grid_spec = pltpu.PrefetchScalarGridSpec(
        num_scalar_prefetch=0,
        grid=(padded_rows // rows_per_tile,),
        in_specs=[
            pl.BlockSpec((rows_per_tile, p * f_pad), lambda i: (i, 0)),  # packed x
            full(w["w1"]), full(w["b1"]),
            full(w["w2"]), full(w["b2"]),
            full(w["w3"]), full(w["b3"]),
            full(w["w4"]), full(w["b4"]),
        ],
        out_specs=pl.BlockSpec((rows_per_tile, p), lambda i: (i, 0)),
    )

    out = pl.pallas_call(
        _mlp_kernel,
        out_shape=jax.ShapeDtypeStruct((padded_rows, p), jnp.float32),
        grid_spec=grid_spec,
        compiler_params=pltpu.CompilerParams(
            dimension_semantics=("parallel",),
            vmem_limit_bytes=vmem_limit_bytes,
        ),
    )(x_packed,
      w["w1"], w["b1"],
      w["w2"], w["b2"],
      w["w3"], w["b3"],
      w["w4"], w["b4"])

    # (padded_rows, p) row-major == (b_pad, 1); drop batch padding.
    return out.reshape(b_pad, 1)[:B]


def init_params(key, factor_num):
    """Deterministic PyTorch-style (Kaiming-uniform-ish) init for the 4 Linear layers."""
    dims = [(factor_num, 30), (30, 20), (20, 10), (10, 1)]
    params = {}
    keys = jax.random.split(key, 2 * len(dims))
    for li, (fan_in, fan_out) in enumerate(dims, start=1):
        bound = 1.0 / jnp.sqrt(jnp.float32(fan_in))
        wk, bk = keys[2 * (li - 1)], keys[2 * (li - 1) + 1]
        # stored as (in, out) so the forward computes x @ W + b
        params[f"w{li}"] = jax.random.uniform(
            wk, (fan_in, fan_out), jnp.float32, -bound, bound)
        params[f"b{li}"] = jax.random.uniform(
            bk, (1, fan_out), jnp.float32, -bound, bound)
    return params


def reference_forward(x, params):
    h = x
    for li in range(1, 5):
        h = h @ params[f"w{li}"] + params[f"b{li}"]
        if li < 4:
            h = jnp.maximum(h, 0.0)
    return h


if __name__ == "__main__":
    key = jax.random.PRNGKey(0)
    k_x, k_x2, k_p = jax.random.split(key, 3)

    factor_num = 16  # number of input factors / features
    params = init_params(k_p, factor_num)

    # Main check: batch large enough that the wrapper picks >= 2 grid steps.
    batch = 1024
    x = jax.random.normal(k_x, (batch, factor_num), jnp.float32)
    out = jax.block_until_ready(multi_factor_nn_forward(x, params))
    ref = reference_forward(x, params)
    assert out.shape == (batch, 1)
    assert jnp.allclose(out, ref, atol=1e-4, rtol=1e-4)

    # Ragged small batch: exercises the batch/lane padding path.
    batch2 = 37
    x2 = jax.random.normal(k_x2, (batch2, factor_num), jnp.float32)
    out2 = jax.block_until_ready(multi_factor_nn_forward(x2, params))
    ref2 = reference_forward(x2, params)
    assert out2.shape == (batch2, 1)
    assert jnp.allclose(out2, ref2, atol=1e-4, rtol=1e-4)

    print("KERNEL_OK")
</pallas_src>

<mosaic_0001>
module attributes {stable_mosaic.version = 11 : i64} {
  func.func @_mlp_kernel(%arg0: i32, %arg1: memref<64x128xf32, #tpu.memory_space<vmem>>, %arg2: memref<128x240xf32, #tpu.memory_space<vmem>>, %arg3: memref<1x240xf32, #tpu.memory_space<vmem>>, %arg4: memref<240x160xf32, #tpu.memory_space<vmem>>, %arg5: memref<1x160xf32, #tpu.memory_space<vmem>>, %arg6: memref<160x80xf32, #tpu.memory_space<vmem>>, %arg7: memref<1x80xf32, #tpu.memory_space<vmem>>, %arg8: memref<80x8xf32, #tpu.memory_space<vmem>>, %arg9: memref<1x8xf32, #tpu.memory_space<vmem>>, %arg10: memref<64x8xf32, #tpu.memory_space<vmem>>) attributes {dimension_semantics = [#tpu.dimension_semantics<parallel>], iteration_bounds = array<i64: 2>, scalar_prefetch = 0 : i64, scratch_operands = 0 : i64, tpu.core_type = #tpu.core_type<tc>, window_params = [{transform_indices = @transform_0, window_bounds = array<i64: 64, 128>}, {pipeline_mode = #tpu.pipeline_mode<synchronous>, transform_indices = @transform_1, window_bounds = array<i64: 128, 240>}, {pipeline_mode = #tpu.pipeline_mode<synchronous>, transform_indices = @transform_2, window_bounds = array<i64: 1, 240>}, {pipeline_mode = #tpu.pipeline_mode<synchronous>, transform_indices = @transform_3, window_bounds = array<i64: 240, 160>}, {pipeline_mode = #tpu.pipeline_mode<synchronous>, transform_indices = @transform_4, window_bounds = array<i64: 1, 160>}, {pipeline_mode = #tpu.pipeline_mode<synchronous>, transform_indices = @transform_5, window_bounds = array<i64: 160, 80>}, {pipeline_mode = #tpu.pipeline_mode<synchronous>, transform_indices = @transform_6, window_bounds = array<i64: 1, 80>}, {pipeline_mode = #tpu.pipeline_mode<synchronous>, transform_indices = @transform_7, window_bounds = array<i64: 80, 8>}, {pipeline_mode = #tpu.pipeline_mode<synchronous>, transform_indices = @transform_8, window_bounds = array<i64: 1, 8>}, {transform_indices = @transform_9, window_bounds = array<i64: 64, 8>}]} {
    %c0 = arith.constant 0 : index
    %c0_0 = arith.constant 0 : index
    %0 = vector.load %arg1[%c0, %c0_0] : memref<64x128xf32, #tpu.memory_space<vmem>>, vector<64x128xf32>
    %c0_1 = arith.constant 0 : index
    %c0_2 = arith.constant 0 : index
    %1 = vector.load %arg2[%c0_1, %c0_2] : memref<128x240xf32, #tpu.memory_space<vmem>>, vector<128x240xf32>
    %cst = arith.constant dense<0.000000e+00> : vector<64x240xf32>
    %2 = tpu.matmul %0, %1, %cst {dimension_numbers = #tpu.dot_dimension_numbers<[1], [0], [0], [1], [0, 0, 1, 1], [], []>} : vector<64x128xf32>, vector<128x240xf32>, vector<64x240xf32> -> vector<64x240xf32>
    %c0_3 = arith.constant 0 : index
    %c0_4 = arith.constant 0 : index
    %3 = vector.load %arg3[%c0_3, %c0_4] : memref<1x240xf32, #tpu.memory_space<vmem>>, vector<1x240xf32>
    %4 = vector.broadcast %3 : vector<1x240xf32> to vector<64x240xf32>
    %5 = arith.addf %2, %4 : vector<64x240xf32>
    %cst_5 = arith.constant 0.000000e+00 : f32
    %6 = vector.broadcast %cst_5 : f32 to vector<64x240xf32>
    %7 = arith.maximumf %5, %6 : vector<64x240xf32>
    %c0_6 = arith.constant 0 : index
    %c0_7 = arith.constant 0 : index
    %8 = vector.load %arg4[%c0_6, %c0_7] : memref<240x160xf32, #tpu.memory_space<vmem>>, vector<240x160xf32>
    %cst_8 = arith.constant dense<0.000000e+00> : vector<64x160xf32>
    %9 = tpu.matmul %7, %8, %cst_8 {dimension_numbers = #tpu.dot_dimension_numbers<[1], [0], [0], [1], [0, 0, 1, 1], [], []>} : vector<64x240xf32>, vector<240x160xf32>, vector<64x160xf32> -> vector<64x160xf32>
    %c0_9 = arith.constant 0 : index
    %c0_10 = arith.constant 0 : index
    %10 = vector.load %arg5[%c0_9, %c0_10] : memref<1x160xf32, #tpu.memory_space<vmem>>, vector<1x160xf32>
    %11 = vector.broadcast %10 : vector<1x160xf32> to vector<64x160xf32>
    %12 = arith.addf %9, %11 : vector<64x160xf32>
    %cst_11 = arith.constant 0.000000e+00 : f32
    %13 = vector.broadcast %cst_11 : f32 to vector<64x160xf32>
    %14 = arith.maximumf %12, %13 : vector<64x160xf32>
    %c0_12 = arith.constant 0 : index
    %c0_13 = arith.constant 0 : index
    %15 = vector.load %arg6[%c0_12, %c0_13] : memref<160x80xf32, #tpu.memory_space<vmem>>, vector<160x80xf32>
    %cst_14 = arith.constant dense<0.000000e+00> : vector<64x80xf32>
    %16 = tpu.matmul %14, %15, %cst_14 {dimension_numbers = #tpu.dot_dimension_numbers<[1], [0], [0], [1], [0, 0, 1, 1], [], []>} : vector<64x160xf32>, vector<160x80xf32>, vector<64x80xf32> -> vector<64x80xf32>
    %c0_15 = arith.constant 0 : index
    %c0_16 = arith.constant 0 : index
    %17 = vector.load %arg7[%c0_15, %c0_16] : memref<1x80xf32, #tpu.memory_space<vmem>>, vector<1x80xf32>
    %18 = vector.broadcast %17 : vector<1x80xf32> to vector<64x80xf32>
    %19 = arith.addf %16, %18 : vector<64x80xf32>
    %cst_17 = arith.constant 0.000000e+00 : f32
    %20 = vector.broadcast %cst_17 : f32 to vector<64x80xf32>
    %21 = arith.maximumf %19, %20 : vector<64x80xf32>
    %c0_18 = arith.constant 0 : index
    %c0_19 = arith.constant 0 : index
    %22 = vector.load %arg8[%c0_18, %c0_19] : memref<80x8xf32, #tpu.memory_space<vmem>>, vector<80x8xf32>
    %cst_20 = arith.constant dense<0.000000e+00> : vector<64x8xf32>
    %23 = tpu.matmul %21, %22, %cst_20 {dimension_numbers = #tpu.dot_dimension_numbers<[1], [0], [0], [1], [0, 0, 1, 1], [], []>} : vector<64x80xf32>, vector<80x8xf32>, vector<64x8xf32> -> vector<64x8xf32>
    %c0_21 = arith.constant 0 : index
    %c0_22 = arith.constant 0 : index
    %24 = vector.load %arg9[%c0_21, %c0_22] : memref<1x8xf32, #tpu.memory_space<vmem>>, vector<1x8xf32>
    %25 = vector.broadcast %24 : vector<1x8xf32> to vector<64x8xf32>
    %26 = arith.addf %23, %25 : vector<64x8xf32>
    %c0_23 = arith.constant 0 : index
    %c0_24 = arith.constant 0 : index
    %27 = vector.load %arg10[%c0_23, %c0_24] : memref<64x8xf32, #tpu.memory_space<vmem>>, vector<64x8xf32>
    tpu.vector_store %arg10[%c0_23, %c0_24], %26 {strides = array<i32>} : memref<64x8xf32, #tpu.memory_space<vmem>>, vector<64x8xf32>,
    return
  }
  func.func @transform_0(%arg0: i32) -> (i32, i32) {
    %c0_i32 = arith.constant 0 : i32
    %c0_i32_0 = arith.constant 0 : i32
    return %arg0, %c0_i32 : i32, i32
  }
  func.func @transform_1(%arg0: i32) -> (i32, i32) {
    %c0_i32 = arith.constant 0 : i32
    %c0_i32_0 = arith.constant 0 : i32
    %c0_i32_1 = arith.constant 0 : i32
    return %c0_i32, %c0_i32_0 : i32, i32
  }
  func.func @transform_2(%arg0: i32) -> (i32, i32) {
    %c0_i32 = arith.constant 0 : i32
    %c0_i32_0 = arith.constant 0 : i32
    %c0_i32_1 = arith.constant 0 : i32
    return %c0_i32, %c0_i32_0 : i32, i32
  }
  func.func @transform_3(%arg0: i32) -> (i32, i32) {
    %c0_i32 = arith.constant 0 : i32
    %c0_i32_0 = arith.constant 0 : i32
    %c0_i32_1 = arith.constant 0 : i32
    return %c0_i32, %c0_i32_0 : i32, i32
  }
  func.func @transform_4(%arg0: i32) -> (i32, i32) {
    %c0_i32 = arith.constant 0 : i32
    %c0_i32_0 = arith.constant 0 : i32
    %c0_i32_1 = arith.constant 0 : i32
    return %c0_i32, %c0_i32_0 : i32, i32
  }
  func.func @transform_5(%arg0: i32) -> (i32, i32) {
    %c0_i32 = arith.constant 0 : i32
    %c0_i32_0 = arith.constant 0 : i32
    %c0_i32_1 = arith.constant 0 : i32
    return %c0_i32, %c0_i32_0 : i32, i32
  }
  func.func @transform_6(%arg0: i32) -> (i32, i32) {
    %c0_i32 = arith.constant 0 : i32
    %c0_i32_0 = arith.constant 0 : i32
    %c0_i32_1 = arith.constant 0 : i32
    return %c0_i32, %c0_i32_0 : i32, i32
  }
  func.func @transform_7(%arg0: i32) -> (i32, i32) {
    %c0_i32 = arith.constant 0 : i32
    %c0_i32_0 = arith.constant 0 : i32
    %c0_i32_1 = arith.constant 0 : i32
    return %c0_i32, %c0_i32_0 : i32, i32
  }
  func.func @transform_8(%arg0: i32) -> (i32, i32) {
    %c0_i32 = arith.constant 0 : i32
    %c0_i32_0 = arith.constant 0 : i32
    %c0_i32_1 = arith.constant 0 : i32
    return %c0_i32, %c0_i32_0 : i32, i32
  }
  func.func @transform_9(%arg0: i32) -> (i32, i32) {
    %c0_i32 = arith.constant 0 : i32
    %c0_i32_0 = arith.constant 0 : i32
    return %arg0, %c0_i32 : i32, i32
  }
}

</mosaic_0001>

<llo_original>
// kernel: tpu_custom_call.1
$region0: #{tpu_custom_call.1}
  #allocation0 [shape = 'u32[]', space=smem, size = 0x4, offset = 0x4, fixed_abs, tag = 'smem constant byte address 0x4 - core index']
  #allocation1 [shape = 'u32[72,128]{1,0:T(1,128)}', space=vmem, size = 0x9000, scoped, tag = 'internal scratch']
  %s0 = inlined_call_operand.vmem [shape: f32[128,128], index: 0, kind: input, shape index: {}]
  %s1 = inlined_call_operand.vmem [shape: f32[128,240], index: 1, kind: input, shape index: {}]
  %s2 = inlined_call_operand.vmem [shape: f32[1,240], index: 2, kind: input, shape index: {}]
  %s3 = inlined_call_operand.vmem [shape: f32[240,160], index: 3, kind: input, shape index: {}]
  %s4 = inlined_call_operand.vmem [shape: f32[1,160], index: 4, kind: input, shape index: {}]
  %s5 = inlined_call_operand.vmem [shape: f32[160,80], index: 5, kind: input, shape index: {}]
  %s6 = inlined_call_operand.vmem [shape: f32[1,80], index: 6, kind: input, shape index: {}]
  %s7 = inlined_call_operand.vmem [shape: f32[80,8], index: 7, kind: input, shape index: {}]
  %s8 = inlined_call_operand.vmem [shape: f32[1,8], index: 8, kind: input, shape index: {}]
  %s9 = inlined_call_operand.vmem [shape: f32[128,8], index: 9, kind: output, shape index: {}]
  %s10 = sld [smem:[#allocation0]]
  $region69: #{tpu_custom_call.1} parent=0
    _
  %s12 = ssub.s32 1, %s10
  %s13 = scalar_select 0, %s12, %s10
  loop: start=0, step=1, limit=4
  $region2: #{tpu_custom_call.1} parent=0 // loop_pre_header
    _
  $region3: #{tpu_custom_call.1} parent=0 // loop_header
    %s15 = sphi 0, %s19
    %p16 = scmp.ge.s32.totalorder %s15, 4
    %s25 = sphi 0, %s27
    %s28 = sphi 0, %s25
    %s29 = sphi 0, %s28
    %s45 = sphi 0, %s29
    %s49 = sphi 0, %s49
    %s51 = sphi 0, %s49
    %s52 = sphi 0, %s51
    %s66 = sphi 0, %s52
    %s70 = sphi 0, %s70
    %s72 = sphi 0, %s70
    %s73 = sphi 0, %s72
    %s87 = sphi 0, %s73
    %s91 = sphi 0, %s91
    %s93 = sphi 0, %s91
    %s94 = sphi 0, %s93
    %s108 = sphi 0, %s94
    %s112 = sphi 0, %s112
    %s114 = sphi 0, %s112
    %s115 = sphi 0, %s114
    %s129 = sphi 0, %s115
    %s133 = sphi 0, %s133
    %s135 = sphi 0, %s133
    %s136 = sphi 0, %s135
    %s150 = sphi 0, %s136
    %s154 = sphi 0, %s154
    %s156 = sphi 0, %s154
    %s157 = sphi 0, %s156
    %s171 = sphi 0, %s157
    %s175 = sphi 0, %s175
    %s177 = sphi 0, %s175
    %s178 = sphi 0, %s177
    %s192 = sphi 0, %s178
    %s196 = sphi 0, %s196
    %s198 = sphi 0, %s196
    %s199 = sphi 0, %s198
    %s213 = sphi 0, %s199
    %s219 = sphi 0, %s221
    %s222 = sphi 0, %s219
    %s223 = sphi 0, %s222
    %s239 = sphi 0, %s223
  $region4: #{tpu_custom_call.1} parent=0 // loop_header_branch
    %18 = sbr.rel (%p16) target = $region8
  $region5: #{tpu_custom_call.1} parent=0 // loop_body
    %s20 = ssub.s32 %s15, 1
    %s21 = ssub.s32 %s15, 2
    %s22 = sadd.s32 %s15, 1
    %s23 = ssub.s32 %s15, %s22
    %p24 = scmp.eq.s32.totalorder %s23, 0
    %s26 = sadd.s32 %s25, 1
    %s27 = scalar_select %p24, %s25, %s26
    %p30 = pneg %p24
    %p31 = scmp.eq.s32.totalorder %s15, 1
    %p32 = por %p30, %p31
    %p33 = scmp.ne.s32.totalorder %s25, %s28
    %p34 = scmp.eq.s32.totalorder %s15, 0
    %p35 = por %p33, %p34
    %p36 = scmp.ne.s32.totalorder %s25, %s28
    %p37 = scmp.eq.s32.totalorder %s20, 1
    %p38 = por %p36, %p37
    %p39 = scmp.ne.s32.totalorder %s28, %s29
    %p40 = scmp.eq.s32.totalorder %s20, 0
    %p41 = por %p39, %p40
    %p42 = scmp.ne.s32.totalorder %s28, %s29
    %p43 = scmp.eq.s32.totalorder %s21, 1
    %p44 = por %p42, %p43
    %p46 = scmp.ne.s32.totalorder %s29, %s45
    %p47 = scmp.eq.s32.totalorder %s21, 0
    %p48 = por %p46, %p47
    %s50 = sadd.s32 %s49, 1
    %p53 = scmp.eq.s32.totalorder %s15, 1
    %p54 = scmp.ne.s32.totalorder %s49, %s51
    %p55 = scmp.eq.s32.totalorder %s15, 0
    %p56 = por %p54, %p55
    %p57 = scmp.ne.s32.totalorder %s49, %s51
    %p58 = scmp.eq.s32.totalorder %s20, 1
    %p59 = por %p57, %p58
    %p60 = scmp.ne.s32.totalorder %s51, %s52
    %p61 = scmp.eq.s32.totalorder %s20, 0
    %p62 = por %p60, %p61
    %p63 = scmp.ne.s32.totalorder %s51, %s52
    %p64 = scmp.eq.s32.totalorder %s21, 1
    %p65 = por %p63, %p64
    %p67 = scmp.ne.s32.totalorder %s52, %s66
    %p68 = scmp.eq.s32.totalorder %s21, 0
    %p69 = por %p67, %p68
    %s71 = sadd.s32 %s70, 1
    %p74 = scmp.eq.s32.totalorder %s15, 1
    %p75 = scmp.ne.s32.totalorder %s70, %s72
    %p76 = scmp.eq.s32.totalorder %s15, 0
    %p77 = por %p75, %p76
    %p78 = scmp.ne.s32.totalorder %s70, %s72
    %p79 = scmp.eq.s32.totalorder %s20, 1
    %p80 = por %p78, %p79
    %p81 = scmp.ne.s32.totalorder %s72, %s73
    %p82 = scmp.eq.s32.totalorder %s20, 0
    %p83 = por %p81, %p82
    %p84 = scmp.ne.s32.totalorder %s72, %s73
    %p85 = scmp.eq.s32.totalorder %s21, 1
    %p86 = por %p84, %p85
    %p88 = scmp.ne.s32.totalorder %s73, %s87
    %p89 = scmp.eq.s32.totalorder %s21, 0
    %p90 = por %p88, %p89
    %s92 = sadd.s32 %s91, 1
    %p95 = scmp.eq.s32.totalorder %s15, 1
    %p96 = scmp.ne.s32.totalorder %s91, %s93
    %p97 = scmp.eq.s32.totalorder %s15, 0
    %p98 = por %p96, %p97
    %p99 = scmp.ne.s32.totalorder %s91, %s93
    %p100 = scmp.eq.s32.totalorder %s20, 1
    %p101 = por %p99, %p100
    %p102 = scmp.ne.s32.totalorder %s93, %s94
    %p103 = scmp.eq.s32.totalorder %s20, 0
    %p104 = por %p102, %p103
    %p105 = scmp.ne.s32.totalorder %s93, %s94
    %p106 = scmp.eq.s32.totalorder %s21, 1
    %p107 = por %p105, %p106
    %p109 = scmp.ne.s32.totalorder %s94, %s108
    %p110 = scmp.eq.s32.totalorder %s21, 0
    %p111 = por %p109, %p110
    %s113 = sadd.s32 %s112, 1
    %p116 = scmp.eq.s32.totalorder %s15, 1
    %p117 = scmp.ne.s32.totalorder %s112, %s114
    %p118 = scmp.eq.s32.totalorder %s15, 0
    %p119 = por %p117, %p118
    %p120 = scmp.ne.s32.totalorder %s112, %s114
    %p121 = scmp.eq.s32.totalorder %s20, 1
    %p122 = por %p120, %p121
    %p123 = scmp.ne.s32.totalorder %s114, %s115
    %p124 = scmp.eq.s32.totalorder %s20, 0
    %p125 = por %p123, %p124
    %p126 = scmp.ne.s32.totalorder %s114, %s115
    %p127 = scmp.eq.s32.totalorder %s21, 1
    %p128 = por %p126, %p127
    %p130 = scmp.ne.s32.totalorder %s115, %s129
    %p131 = scmp.eq.s32.totalorder %s21, 0
    %p132 = por %p130, %p131
    %s134 = sadd.s32 %s133, 1
    %p137 = scmp.eq.s32.totalorder %s15, 1
    %p138 = scmp.ne.s32.totalorder %s133, %s135
    %p139 = scmp.eq.s32.totalorder %s15, 0
    %p140 = por %p138, %p139
    %p141 = scmp.ne.s32.totalorder %s133, %s135
    %p142 = scmp.eq.s32.totalorder %s20, 1
    %p143 = por %p141, %p142
    %p144 = scmp.ne.s32.totalorder %s135, %s136
    %p145 = scmp.eq.s32.totalorder %s20, 0
    %p146 = por %p144, %p145
    %p147 = scmp.ne.s32.totalorder %s135, %s136
    %p148 = scmp.eq.s32.totalorder %s21, 1
    %p149 = por %p147, %p148
    %p151 = scmp.ne.s32.totalorder %s136, %s150
    %p152 = scmp.eq.s32.totalorder %s21, 0
    %p153 = por %p151, %p152
    %s155 = sadd.s32 %s154, 1
    %p158 = scmp.eq.s32.totalorder %s15, 1
    %p159 = scmp.ne.s32.totalorder %s154, %s156
    %p160 = scmp.eq.s32.totalorder %s15, 0
    %p161 = por %p159, %p160
    %p162 = scmp.ne.s32.totalorder %s154, %s156
    %p163 = scmp.eq.s32.totalorder %s20, 1
    %p164 = por %p162, %p163
    %p165 = scmp.ne.s32.totalorder %s156, %s157
    %p166 = scmp.eq.s32.totalorder %s20, 0
    %p167 = por %p165, %p166
    %p168 = scmp.ne.s32.totalorder %s156, %s157
    %p169 = scmp.eq.s32.totalorder %s21, 1
    %p170 = por %p168, %p169
    %p172 = scmp.ne.s32.totalorder %s157, %s171
    %p173 = scmp.eq.s32.totalorder %s21, 0
    %p174 = por %p172, %p173
    %s176 = sadd.s32 %s175, 1
    %p179 = scmp.eq.s32.totalorder %s15, 1
    %p180 = scmp.ne.s32.totalorder %s175, %s177
    %p181 = scmp.eq.s32.totalorder %s15, 0
    %p182 = por %p180, %p181
    %p183 = scmp.ne.s32.totalorder %s175, %s177
    %p184 = scmp.eq.s32.totalorder %s20, 1
    %p185 = por %p183, %p184
    %p186 = scmp.ne.s32.totalorder %s177, %s178
    %p187 = scmp.eq.s32.totalorder %s20, 0
    %p188 = por %p186, %p187
    %p189 = scmp.ne.s32.totalorder %s177, %s178
    %p190 = scmp.eq.s32.totalorder %s21, 1
    %p191 = por %p189, %p190
    %p193 = scmp.ne.s32.totalorder %s178, %s192
    %p194 = scmp.eq.s32.totalorder %s21, 0
    %p195 = por %p193, %p194
    %s197 = sadd.s32 %s196, 1
    %p200 = scmp.eq.s32.totalorder %s15, 1
    %p201 = scmp.ne.s32.totalorder %s196, %s198
    %p202 = scmp.eq.s32.totalorder %s15, 0
    %p203 = por %p201, %p202
    %p204 = scmp.ne.s32.totalorder %s196, %s198
    %p205 = scmp.eq.s32.totalorder %s20, 1
    %p206 = por %p204, %p205
    %p207 = scmp.ne.s32.totalorder %s198, %s199
    %p208 = scmp.eq.s32.totalorder %s20, 0
    %p209 = por %p207, %p208
    %p210 = scmp.ne.s32.totalorder %s198, %s199
    %p211 = scmp.eq.s32.totalorder %s21, 1
    %p212 = por %p210, %p211
    %p214 = scmp.ne.s32.totalorder %s199, %s213
    %p215 = scmp.eq.s32.totalorder %s21, 0
    %p216 = por %p214, %p215
    %s217 = ssub.s32 %s15, %s22
    %p218 = scmp.eq.s32.totalorder %s217, 0
    %s220 = sadd.s32 %s219, 1
    %s221 = scalar_select %p218, %s219, %s220
    %p224 = pneg %p218
    %p225 = scmp.eq.s32.totalorder %s15, 1
    %p226 = por %p224, %p225
    %p227 = scmp.ne.s32.totalorder %s219, %s222
    %p228 = scmp.eq.s32.totalorder %s15, 0
    %p229 = por %p227, %p228
    %p230 = scmp.ne.s32.totalorder %s219, %s222
    %p231 = scmp.eq.s32.totalorder %s20, 1
    %p232 = por %p230, %p231
    %p233 = scmp.ne.s32.totalorder %s222, %s223
    %p234 = scmp.eq.s32.totalorder %s20, 0
    %p235 = por %p233, %p234
    %p236 = scmp.ne.s32.totalorder %s222, %s223
    %p237 = scmp.eq.s32.totalorder %s21, 1
    %p238 = por %p236, %p237
    %p240 = scmp.ne.s32.totalorder %s223, %s239
    %p241 = scmp.eq.s32.totalorder %s21, 0
    %p242 = por %p240, %p241
    %p243 = scmp.le.s32.totalorder 1, %s15
    %p244 = scmp.lt.s32.totalorder %s15, 3
    %p245 = pnand %p243, %p244
    %p246 = pneg %p245
    // Predicated region
    $region9: #{tpu_custom_call.1} parent=5 // pred_check
      _
    $region10: #{tpu_custom_call.1} parent=5 // pred_check_branch
      %248 = sbr.rel (%p245) target = $region12
    $region11: #{tpu_custom_call.1} parent=5 // pred_region
      %s249 = ssub.s32 %s15, 1
      // Predicated region
      $region13: #{tpu_custom_call.1} parent=11 // pred_check
        %p250 = pneg %p62
      $region14: #{tpu_custom_call.1} parent=11 // pred_check_branch
        %252 = sbr.rel (%p250) target = $region16
      $region15: #{tpu_custom_call.1} parent=11 // pred_region
        _
      $region16: #{tpu_custom_call.1} parent=11 // pred_fallthru
        _
      // Predicated region
      $region17: #{tpu_custom_call.1} parent=11 // pred_check
        %p253 = pneg %p83
      $region18: #{tpu_custom_call.1} parent=11 // pred_check_branch
        %255 = sbr.rel (%p253) target = $region20
      $region19: #{tpu_custom_call.1} parent=11 // pred_region
        _
      $region20: #{tpu_custom_call.1} parent=11 // pred_fallthru
        _
      // Predicated region
      $region21: #{tpu_custom_call.1} parent=11 // pred_check
        %p256 = pneg %p104
      $region22: #{tpu_custom_call.1} parent=11 // pred_check_branch
        %258 = sbr.rel (%p256) target = $region24
      $region23: #{tpu_custom_call.1} parent=11 // pred_region
        _
      $region24: #{tpu_custom_call.1} parent=11 // pred_fallthru
        _
      // Predicated region
      $region25: #{tpu_custom_call.1} parent=11 // pred_check
        %p259 = pneg %p125
      $region26: #{tpu_custom_call.1} parent=11 // pred_check_branch
        %261 = sbr.rel (%p259) target = $region28
      $region27: #{tpu_custom_call.1} parent=11 // pred_region
        _
      $region28: #{tpu_custom_call.1} parent=11 // pred_fallthru
        _
      // Predicated region
      $region29: #{tpu_custom_call.1} parent=11 // pred_check
        %p262 = pneg %p146
      $region30: #{tpu_custom_call.1} parent=11 // pred_check_branch
        %264 = sbr.rel (%p262) target = $region32
      $region31: #{tpu_custom_call.1} parent=11 // pred_region
        _
      $region32: #{tpu_custom_call.1} parent=11 // pred_fallthru
        _
      // Predicated region
      $region33: #{tpu_custom_call.1} parent=11 // pred_check
        %p265 = pneg %p167
      $region34: #{tpu_custom_call.1} parent=11 // pred_check_branch
        %267 = sbr.rel (%p265) target = $region36
      $region35: #{tpu_custom_call.1} parent=11 // pred_region
        _
      $region36: #{tpu_custom_call.1} parent=11 // pred_fallthru
        _
      // Predicated region
      $region37: #{tpu_custom_call.1} parent=11 // pred_check
        %p268 = pneg %p188
      $region38: #{tpu_custom_call.1} parent=11 // pred_check_branch
        %270 = sbr.rel (%p268) target = $region40
      $region39: #{tpu_custom_call.1} parent=11 // pred_region
        _
      $region40: #{tpu_custom_call.1} parent=11 // pred_fallthru
        _
      // Predicated region
      $region41: #{tpu_custom_call.1} parent=11 // pred_check
        %p271 = pneg %p209
      $region42: #{tpu_custom_call.1} parent=11 // pred_check_branch
        %273 = sbr.rel (%p271) target = $region44
      $region43: #{tpu_custom_call.1} parent=11 // pred_region
        _
      $region44: #{tpu_custom_call.1} parent=11 // pred_fallthru
        _
    $region12: #{tpu_custom_call.1} parent=5 // pred_fallthru
      _
    %p274 = scmp.lt.s32.totalorder %s15, 2
    // Predicated region
    $region45: #{tpu_custom_call.1} parent=5 // pred_check
      %p275 = pneg %p274
    $region46: #{tpu_custom_call.1} parent=5 // pred_check_branch
      %277 = sbr.rel (%p275) target = $region48
    $region47: #{tpu_custom_call.1} parent=5 // pred_region
      // Predicated region
      $region49: #{tpu_custom_call.1} parent=47 // pred_check
        %p278 = pneg %p35
      $region50: #{tpu_custom_call.1} parent=47 // pred_check_branch
        %280 = sbr.rel (%p278) target = $region52
      $region51: #{tpu_custom_call.1} parent=47 // pred_region
        %s281 = smul.u32 8, %s15
        %p282 = scmp.lt.s32.totalorder %s281, 15
        %s283 = scalar_select %p282, %s281, 15
        %s284 = smul.addr %s283, 8
        %s285 = scalar_lea.vmem %s0, %s284
        %s286 = smul.u32 8, %s15
      $region52: #{tpu_custom_call.1} parent=47 // pred_fallthru
        _
    $region48: #{tpu_custom_call.1} parent=5 // pred_fallthru
      _
    %p287 = scmp.le.s32.totalorder 1, %s15
    %p288 = scmp.lt.s32.totalorder %s15, 3
    %p289 = pnand %p287, %p288
    %p290 = pneg %p289
    // Predicated region
    $region53: #{tpu_custom_call.1} parent=5 // pred_check
      _
    $region54: #{tpu_custom_call.1} parent=5 // pred_check_branch
      %292 = sbr.rel (%p289) target = $region56
    $region55: #{tpu_custom_call.1} parent=5 // pred_region
      %s293 = ssub.s32 %s15, 1
      %s294 = smul.u32 8, %s20
      %p295 = scmp.lt.s32.totalorder %s294, 15
      %s296 = scalar_select %p295, %s294, 15
      %s297 = smul.addr %s296, 8
      %s298 = scalar_lea.vmem %s0, %s297
      %p299 = pneg %p41
      %p300 = pneg %p38
      %p301 = pneg %p62
      %p302 = pneg %p59
      %p303 = pneg %p83
      %p304 = pneg %p80
      %p305 = pneg %p104
      %p306 = pneg %p101
      %p307 = pneg %p125
      %p308 = pneg %p122
      %p309 = pneg %p146
      %p310 = pneg %p143
      %p311 = pneg %p167
      %p312 = pneg %p164
      %p313 = pneg %p188
      %p314 = pneg %p185
      %p315 = pneg %p209
      %p316 = pneg %p206
      %p317 = pneg %p235
      %p318 = pneg %p232
      %s319 = smul.u32 8, %s20
      %p320 = scmp.lt.s32.totalorder %s319, 15
      %s321 = scalar_select %p320, %s319, 15
      %s322 = smul.addr %s321, 8
      %s323 = scalar_lea.vmem %s9, %s322
      %s324 = smul.u32 8, %s20
      %p325 = scmp.lt.s32.totalorder %s324, 15
      %s326 = scalar_select %p325, %s324, 15
      %s327 = smul.addr %s326, 8
      %s328 = scalar_lea.vmem %s0, %s327
      %s329 = smul.u32 8, %s20
      %s330 = smul.u32 8, %s20
      %p331 = scmp.lt.s32.totalorder %s330, 15
      %s332 = scalar_select %p331, %s330, 15
      %s333 = smul.addr %s332, 8
      %s334 = scalar_lea.vmem %s9, %s333
      %s335 = smul.u32 8, %s20
      %v336 = vld [vmem:[%s328] sm:$0xff]
      %v337 = vld [vmem:[%s328 + $0x8] sm:$0xff]
      %v338 = vld [vmem:[%s328 + $0x10] sm:$0xff]
      %v339 = vld [vmem:[%s328 + $0x18] sm:$0xff]
      %v340 = vld [vmem:[%s328 + $0x20] sm:$0xff]
      %v341 = vld [vmem:[%s328 + $0x28] sm:$0xff]
      %v342 = vld [vmem:[%s328 + $0x30] sm:$0xff]
      %v343 = vld [vmem:[%s328 + $0x38] sm:$0xff]
      %v344 = vld [vmem:[%s1] sm:$0xff]
      %v345 = vld [vmem:[%s1 + $0x8] sm:$0xff]
      %v346 = vld [vmem:[%s1 + $0x10] sm:$0xff]
      %v347 = vld [vmem:[%s1 + $0x18] sm:$0xff]
      %v348 = vld [vmem:[%s1 + $0x20] sm:$0xff]
      %v349 = vld [vmem:[%s1 + $0x28] sm:$0xff]
      %v350 = vld [vmem:[%s1 + $0x30] sm:$0xff]
      %v351 = vld [vmem:[%s1 + $0x38] sm:$0xff]
      %v352 = vld [vmem:[%s1 + $0x40] sm:$0xff]
      %v353 = vld [vmem:[%s1 + $0x48] sm:$0xff]
      %v354 = vld [vmem:[%s1 + $0x50] sm:$0xff]
      %v355 = vld [vmem:[%s1 + $0x58] sm:$0xff]
      %v356 = vld [vmem:[%s1 + $0x60] sm:$0xff]
      %v357 = vld [vmem:[%s1 + $0x68] sm:$0xff]
      %v358 = vld [vmem:[%s1 + $0x70] sm:$0xff]
      %v359 = vld [vmem:[%s1 + $0x78] sm:$0xff]
      %v360 = vld [vmem:[%s1 + $0x80] sm:$0xff]
      %v361 = vld [vmem:[%s1 + $0x88] sm:$0xff]
      %v362 = vld [vmem:[%s1 + $0x90] sm:$0xff]
      %v363 = vld [vmem:[%s1 + $0x98] sm:$0xff]
      %v364 = vld [vmem:[%s1 + $0xa0] sm:$0xff]
      %v365 = vld [vmem:[%s1 + $0xa8] sm:$0xff]
      %v366 = vld [vmem:[%s1 + $0xb0] sm:$0xff]
      %v367 = vld [vmem:[%s1 + $0xb8] sm:$0xff]
      %v368 = vld [vmem:[%s1 + $0xc0] sm:$0xff]
      %v369 = vld [vmem:[%s1 + $0xc8] sm:$0xff]
      %v370 = vld [vmem:[%s1 + $0xd0] sm:$0xff]
      %v371 = vld [vmem:[%s1 + $0xd8] sm:$0xff]
      %v372 = vld [vmem:[%s1 + $0xe0] sm:$0xff]
      %v373 = vld [vmem:[%s1 + $0xe8] sm:$0xff]
      %v374 = vld [vmem:[%s1 + $0xf0] sm:$0xff]
      %v375 = vld [vmem:[%s1 + $0xf8] sm:$0xff]
      %v376 = vld [vmem:[%s2] sm:$0x3]
      %v378 = vperm.slane %v376, 0
      %v379 = vperm.slane %v376, 1
      %382 = vmatpush.msra.mxu0 %v374
      %383 = vmatpush.msra.mxu0 %v372
      %384 = vmatpush.msra.mxu0 %v370
      %385 = vmatpush.msra.mxu0 %v368
      %386 = vmatpush.msra.mxu0 %v366
      %387 = vmatpush.msra.mxu0 %v364
      %388 = vmatpush.msra.mxu0 %v362
      %389 = vmatpush.msra.mxu0 %v360
      %390 = vmatpush.msra.mxu0 %v358
      %391 = vmatpush.msra.mxu0 %v356
      %392 = vmatpush.msra.mxu0 %v354
      %393 = vmatpush.msra.mxu0 %v352
      %394 = vmatpush.msra.mxu0 %v350
      %395 = vmatpush.msra.mxu0 %v348
      %396 = vmatpush.msra.mxu0 %v346
      %397 = vmatpush.msra.mxu0 %v344
      %398 = vmatmul.f32.gmra.mxu0 %v336
      %v399 = vpop.f32.mrf.mxu0
      %v400 = vadd.f32 %v378, %v399
      %401 = vmatmul.f32.gmra.mxu0 %v337
      %v402 = vpop.f32.mrf.mxu0
      %v403 = vadd.f32 %v378, %v402
      %404 = vmatmul.f32.gmra.mxu0 %v338
      %v405 = vpop.f32.mrf.mxu0
      %v406 = vadd.f32 %v378, %v405
      %407 = vmatmul.f32.gmra.mxu0 %v339
      %v408 = vpop.f32.mrf.mxu0
      %v409 = vadd.f32 %v378, %v408
      %410 = vmatmul.f32.gmra.mxu0 %v340
      %v411 = vpop.f32.mrf.mxu0
      %v412 = vadd.f32 %v378, %v411
      %413 = vmatmul.f32.gmra.mxu0 %v341
      %v414 = vpop.f32.mrf.mxu0
      %v415 = vadd.f32 %v378, %v414
      %416 = vmatmul.f32.gmra.mxu0 %v342
      %v417 = vpop.f32.mrf.mxu0
      %v418 = vadd.f32 %v378, %v417
      %419 = vmatmul.f32.gmra.mxu0 %v343
      %v420 = vpop.f32.mrf.mxu0
      %v421 = vadd.f32 %v378, %v420
      %422 = vdwg.mxu0
      %423 = vmatpush.msra.mxu0 %v375
      %424 = vmatpush.msra.mxu0 %v373
      %425 = vmatpush.msra.mxu0 %v371
      %426 = vmatpush.msra.mxu0 %v369
      %427 = vmatpush.msra.mxu0 %v367
      %428 = vmatpush.msra.mxu0 %v365
      %429 = vmatpush.msra.mxu0 %v363
      %430 = vmatpush.msra.mxu0 %v361
      %431 = vmatpush.msra.mxu0 %v359
      %432 = vmatpush.msra.mxu0 %v357
      %433 = vmatpush.msra.mxu0 %v355
      %434 = vmatpush.msra.mxu0 %v353
      %435 = vmatpush.msra.mxu0 %v351
      %436 = vmatpush.msra.mxu0 %v349
      %437 = vmatpush.msra.mxu0 %v347
      %438 = vmatpush.msra.mxu0 %v345
      %439 = vmatmul.f32.gmra.mxu0 %v336
      %v440 = vpop.f32.mrf.mxu0
      %v441 = vadd.f32 %v379, %v440
      %442 = vmatmul.f32.gmra.mxu0 %v337
      %v443 = vpop.f32.mrf.mxu0
      %v444 = vadd.f32 %v379, %v443
      %445 = vmatmul.f32.gmra.mxu0 %v338
      %v446 = vpop.f32.mrf.mxu0
      %v447 = vadd.f32 %v379, %v446
      %448 = vmatmul.f32.gmra.mxu0 %v339
      %v449 = vpop.f32.mrf.mxu0
      %v450 = vadd.f32 %v379, %v449
      %451 = vmatmul.f32.gmra.mxu0 %v340
      %v452 = vpop.f32.mrf.mxu0
      %v453 = vadd.f32 %v379, %v452
      %454 = vmatmul.f32.gmra.mxu0 %v341
      %v455 = vpop.f32.mrf.mxu0
      %v456 = vadd.f32 %v379, %v455
      %457 = vmatmul.f32.gmra.mxu0 %v342
      %v458 = vpop.f32.mrf.mxu0
      %v459 = vadd.f32 %v379, %v458
      %460 = vmatmul.f32.gmra.mxu0 %v343
      %v461 = vpop.f32.mrf.mxu0
      %v462 = vadd.f32 %v379, %v461
      %463 = vdwg.mxu0
      %v464 = vmax.f32 %v400, 0.0
      %v465 = vmax.f32 %v441, 0.0
      %v466 = vmax.f32 %v403, 0.0
      %v467 = vmax.f32 %v444, 0.0
      %v468 = vmax.f32 %v406, 0.0
      %v469 = vmax.f32 %v447, 0.0
      %v470 = vmax.f32 %v409, 0.0
      %v471 = vmax.f32 %v450, 0.0
      %v472 = vmax.f32 %v412, 0.0
      %v473 = vmax.f32 %v453, 0.0
      %v474 = vmax.f32 %v415, 0.0
      %v475 = vmax.f32 %v456, 0.0
      %v476 = vmax.f32 %v418, 0.0
      %v477 = vmax.f32 %v459, 0.0
      %v478 = vmax.f32 %v421, 0.0
      %v479 = vmax.f32 %v462, 0.0
      %v480 = vld [vmem:[%s3] sm:$0xff]
      %v481 = vld [vmem:[%s3 + $0x8] sm:$0xff]
      %v482 = vld [vmem:[%s3 + $0x10] sm:$0xff]
      %v483 = vld [vmem:[%s3 + $0x18] sm:$0xff]
      %v484 = vld [vmem:[%s3 + $0x20] sm:$0xff]
      %v485 = vld [vmem:[%s3 + $0x28] sm:$0xff]
      %v486 = vld [vmem:[%s3 + $0x30] sm:$0xff]
      %v487 = vld [vmem:[%s3 + $0x38] sm:$0xff]
      %v488 = vld [vmem:[%s3 + $0x40] sm:$0xff]
      %v489 = vld [vmem:[%s3 + $0x48] sm:$0xff]
      %v490 = vld [vmem:[%s3 + $0x50] sm:$0xff]
      %v491 = vld [vmem:[%s3 + $0x58] sm:$0xff]
      %v492 = vld [vmem:[%s3 + $0x60] sm:$0xff]
      %v493 = vld [vmem:[%s3 + $0x68] sm:$0xff]
      %v494 = vld [vmem:[%s3 + $0x70] sm:$0xff]
      %v495 = vld [vmem:[%s3 + $0x78] sm:$0xff]
      %v496 = vld [vmem:[%s3 + $0x80] sm:$0xff]
      %v497 = vld [vmem:[%s3 + $0x88] sm:$0xff]
      %v498 = vld [vmem:[%s3 + $0x90] sm:$0xff]
      %v499 = vld [vmem:[%s3 + $0x98] sm:$0xff]
      %v500 = vld [vmem:[%s3 + $0xa0] sm:$0xff]
      %v501 = vld [vmem:[%s3 + $0xa8] sm:$0xff]
      %v502 = vld [vmem:[%s3 + $0xb0] sm:$0xff]
      %v503 = vld [vmem:[%s3 + $0xb8] sm:$0xff]
      %v504 = vld [vmem:[%s3 + $0xc0] sm:$0xff]
      %v505 = vld [vmem:[%s3 + $0xc8] sm:$0xff]
      %v506 = vld [vmem:[%s3 + $0xd0] sm:$0xff]
      %v507 = vld [vmem:[%s3 + $0xd8] sm:$0xff]
      %v508 = vld [vmem:[%s3 + $0xe0] sm:$0xff]
      %v509 = vld [vmem:[%s3 + $0xe8] sm:$0xff]
      %v510 = vld [vmem:[%s3 + $0xf0] sm:$0xff]
      %v511 = vld [vmem:[%s3 + $0xf8] sm:$0xff]
      %v512 = vld [vmem:[%s3 + $0x100] sm:$0xff]
      %v513 = vld [vmem:[%s3 + $0x108] sm:$0xff]
      %v514 = vld [vmem:[%s3 + $0x110] sm:$0xff]
      %v515 = vld [vmem:[%s3 + $0x118] sm:$0xff]
      %v516 = vld [vmem:[%s3 + $0x120] sm:$0xff]
      %v517 = vld [vmem:[%s3 + $0x128] sm:$0xff]
      %v518 = vld [vmem:[%s3 + $0x130] sm:$0xff]
      %v519 = vld [vmem:[%s3 + $0x138] sm:$0xff]
      %v520 = vld [vmem:[%s3 + $0x140] sm:$0xff]
      %v521 = vld [vmem:[%s3 + $0x148] sm:$0xff]
      %v522 = vld [vmem:[%s3 + $0x150] sm:$0xff]
      %v523 = vld [vmem:[%s3 + $0x158] sm:$0xff]
      %v524 = vld [vmem:[%s3 + $0x160] sm:$0xff]
      %v525 = vld [vmem:[%s3 + $0x168] sm:$0xff]
      %v526 = vld [vmem:[%s3 + $0x170] sm:$0xff]
      %v527 = vld [vmem:[%s3 + $0x178] sm:$0xff]
      %v528 = vld [vmem:[%s3 + $0x180] sm:$0xff]
      %v529 = vld [vmem:[%s3 + $0x188] sm:$0xff]
      %v530 = vld [vmem:[%s3 + $0x190] sm:$0xff]
      %v531 = vld [vmem:[%s3 + $0x198] sm:$0xff]
      %v532 = vld [vmem:[%s3 + $0x1a0] sm:$0xff]
      %v533 = vld [vmem:[%s3 + $0x1a8] sm:$0xff]
      %v534 = vld [vmem:[%s3 + $0x1b0] sm:$0xff]
      %v535 = vld [vmem:[%s3 + $0x1b8] sm:$0xff]
      %v536 = vld [vmem:[%s3 + $0x1c0] sm:$0xff]
      %v537 = vld [vmem:[%s3 + $0x1c8] sm:$0xff]
      %v538 = vld [vmem:[%s3 + $0x1d0] sm:$0xff]
      %v539 = vld [vmem:[%s3 + $0x1d8] sm:$0xff]
      %v540 = vld [vmem:[%s4] sm:$0x3]
      %v542 = vperm.slane %v540, 0
      %v543 = vperm.slane %v540, 1
      %vm546 = vcmask 916480
      %v548 = vsel %vm546, %v465, 0
      %v551 = vsel %vm546, %v467, 0
      %v554 = vsel %vm546, %v469, 0
      %v557 = vsel %vm546, %v471, 0
      %v560 = vsel %vm546, %v473, 0
      %v563 = vsel %vm546, %v475, 0
      %v566 = vsel %vm546, %v477, 0
      %v569 = vsel %vm546, %v479, 0
      %571 = vmatpush.msra.mxu0 %v510
      %572 = vmatpush.msra.mxu0 %v508
      %573 = vmatpush.msra.mxu0 %v506
      %574 = vmatpush.msra.mxu0 %v504
      %575 = vmatpush.msra.mxu0 %v502
      %576 = vmatpush.msra.mxu0 %v500
      %577 = vmatpush.msra.mxu0 %v498
      %578 = vmatpush.msra.mxu0 %v496
      %579 = vmatpush.msra.mxu0 %v494
      %580 = vmatpush.msra.mxu0 %v492
      %581 = vmatpush.msra.mxu0 %v490
      %582 = vmatpush.msra.mxu0 %v488
      %583 = vmatpush.msra.mxu0 %v486
      %584 = vmatpush.msra.mxu0 %v484
      %585 = vmatpush.msra.mxu0 %v482
      %586 = vmatpush.msra.mxu0 %v480
      %587 = vmatmul.f32.gmra.mxu0 %v464
      %v588 = vpop.f32.mrf.mxu0
      %v589 = vadd.f32 %v542, %v588
      %590 = vmatmul.f32.gmra.mxu0 %v466
      %v591 = vpop.f32.mrf.mxu0
      %v592 = vadd.f32 %v542, %v591
      %593 = vmatmul.f32.gmra.mxu0 %v468
      %v594 = vpop.f32.mrf.mxu0
      %v595 = vadd.f32 %v542, %v594
      %596 = vmatmul.f32.gmra.mxu0 %v470
      %v597 = vpop.f32.mrf.mxu0
      %v598 = vadd.f32 %v542, %v597
      %599 = vmatmul.f32.gmra.mxu0 %v472
      %v600 = vpop.f32.mrf.mxu0
      %v601 = vadd.f32 %v542, %v600
      %602 = vmatmul.f32.gmra.mxu0 %v474
      %v603 = vpop.f32.mrf.mxu0
      %v604 = vadd.f32 %v542, %v603
      %605 = vmatmul.f32.gmra.mxu0 %v476
      %v606 = vpop.f32.mrf.mxu0
      %v607 = vadd.f32 %v542, %v606
      %608 = vmatmul.f32.gmra.mxu0 %v478
      %v609 = vpop.f32.mrf.mxu0
      %v610 = vadd.f32 %v542, %v609
      %611 = vdwg.mxu0
      %612 = vmatpush.msra.mxu0 0.0
      %613 = vmatpush.msra.mxu0 0.0
      %614 = vmatpush.msra.mxu0 %v538
      %615 = vmatpush.msra.mxu0 %v536
      %616 = vmatpush.msra.mxu0 %v534
      %617 = vmatpush.msra.mxu0 %v532
      %618 = vmatpush.msra.mxu0 %v530
      %619 = vmatpush.msra.mxu0 %v528
      %620 = vmatpush.msra.mxu0 %v526
      %621 = vmatpush.msra.mxu0 %v524
      %622 = vmatpush.msra.mxu0 %v522
      %623 = vmatpush.msra.mxu0 %v520
      %624 = vmatpush.msra.mxu0 %v518
      %625 = vmatpush.msra.mxu0 %v516
      %626 = vmatpush.msra.mxu0 %v514
      %627 = vmatpush.msra.mxu0 %v512
      %628 = vmatmul.f32.gmra.mxu0 %v548
      %v629 = vpop.f32.mrf.mxu0
      %v630 = vadd.f32 %v589, %v629
      %631 = vmatmul.f32.gmra.mxu0 %v551
      %v632 = vpop.f32.mrf.mxu0
      %v633 = vadd.f32 %v592, %v632
      %634 = vmatmul.f32.gmra.mxu0 %v554
      %v635 = vpop.f32.mrf.mxu0
      %v636 = vadd.f32 %v595, %v635
      %637 = vmatmul.f32.gmra.mxu0 %v557
      %v638 = vpop.f32.mrf.mxu0
      %v639 = vadd.f32 %v598, %v638
      %640 = vmatmul.f32.gmra.mxu0 %v560
      %v641 = vpop.f32.mrf.mxu0
      %v642 = vadd.f32 %v601, %v641
      %643 = vmatmul.f32.gmra.mxu0 %v563
      %v644 = vpop.f32.mrf.mxu0
      %v645 = vadd.f32 %v604, %v644
      %646 = vmatmul.f32.gmra.mxu0 %v566
      %v647 = vpop.f32.mrf.mxu0
      %v648 = vadd.f32 %v607, %v647
      %649 = vmatmul.f32.gmra.mxu0 %v569
      %v650 = vpop.f32.mrf.mxu0
      %v651 = vadd.f32 %v610, %v650
      %652 = vdwg.mxu0
      %653 = vmatpush.msra.mxu0 %v511
      %654 = vmatpush.msra.mxu0 %v509
      %655 = vmatpush.msra.mxu0 %v507
      %656 = vmatpush.msra.mxu0 %v505
      %657 = vmatpush.msra.mxu0 %v503
      %658 = vmatpush.msra.mxu0 %v501
      %659 = vmatpush.msra.mxu0 %v499
      %660 = vmatpush.msra.mxu0 %v497
      %661 = vmatpush.msra.mxu0 %v495
      %662 = vmatpush.msra.mxu0 %v493
      %663 = vmatpush.msra.mxu0 %v491
      %664 = vmatpush.msra.mxu0 %v489
      %665 = vmatpush.msra.mxu0 %v487
      %666 = vmatpush.msra.mxu0 %v485
      %667 = vmatpush.msra.mxu0 %v483
      %668 = vmatpush.msra.mxu0 %v481
      %669 = vmatmul.f32.gmra.mxu0 %v464
      %v670 = vpop.f32.mrf.mxu0
      %v671 = vadd.f32 %v543, %v670
      %672 = vmatmul.f32.gmra.mxu0 %v466
      %v673 = vpop.f32.mrf.mxu0
      %v674 = vadd.f32 %v543, %v673
      %675 = vmatmul.f32.gmra.mxu0 %v468
      %v676 = vpop.f32.mrf.mxu0
      %v677 = vadd.f32 %v543, %v676
      %678 = vmatmul.f32.gmra.mxu0 %v470
      %v679 = vpop.f32.mrf.mxu0
      %v680 = vadd.f32 %v543, %v679
      %681 = vmatmul.f32.gmra.mxu0 %v472
      %v682 = vpop.f32.mrf.mxu0
      %v683 = vadd.f32 %v543, %v682
      %684 = vmatmul.f32.gmra.mxu0 %v474
      %v685 = vpop.f32.mrf.mxu0
      %v686 = vadd.f32 %v543, %v685
      %687 = vmatmul.f32.gmra.mxu0 %v476
      %v688 = vpop.f32.mrf.mxu0
      %v689 = vadd.f32 %v543, %v688
      %690 = vmatmul.f32.gmra.mxu0 %v478
      %v691 = vpop.f32.mrf.mxu0
      %v692 = vadd.f32 %v543, %v691
      %693 = vdwg.mxu0
      %694 = vmatpush.msra.mxu0 0.0
      %695 = vmatpush.msra.mxu0 0.0
      %696 = vmatpush.msra.mxu0 %v539
      %697 = vmatpush.msra.mxu0 %v537
      %698 = vmatpush.msra.mxu0 %v535
      %699 = vmatpush.msra.mxu0 %v533
      %700 = vmatpush.msra.mxu0 %v531
      %701 = vmatpush.msra.mxu0 %v529
      %702 = vmatpush.msra.mxu0 %v527
      %703 = vmatpush.msra.mxu0 %v525
      %704 = vmatpush.msra.mxu0 %v523
      %705 = vmatpush.msra.mxu0 %v521
      %706 = vmatpush.msra.mxu0 %v519
      %707 = vmatpush.msra.mxu0 %v517
      %708 = vmatpush.msra.mxu0 %v515
      %709 = vmatpush.msra.mxu0 %v513
      %710 = vmatmul.f32.gmra.mxu0 %v548
      %v711 = vpop.f32.mrf.mxu0
      %v712 = vadd.f32 %v671, %v711
      %713 = vmatmul.f32.gmra.mxu0 %v551
      %v714 = vpop.f32.mrf.mxu0
      %v715 = vadd.f32 %v674, %v714
      %716 = vmatmul.f32.gmra.mxu0 %v554
      %v717 = vpop.f32.mrf.mxu0
      %v718 = vadd.f32 %v677, %v717
      %719 = vmatmul.f32.gmra.mxu0 %v557
      %v720 = vpop.f32.mrf.mxu0
      %v721 = vadd.f32 %v680, %v720
      %722 = vmatmul.f32.gmra.mxu0 %v560
      %v723 = vpop.f32.mrf.mxu0
      %v724 = vadd.f32 %v683, %v723
      %725 = vmatmul.f32.gmra.mxu0 %v563
      %v726 = vpop.f32.mrf.mxu0
      %v727 = vadd.f32 %v686, %v726
      %728 = vmatmul.f32.gmra.mxu0 %v566
      %v729 = vpop.f32.mrf.mxu0
      %v730 = vadd.f32 %v689, %v729
      %731 = vmatmul.f32.gmra.mxu0 %v569
      %v732 = vpop.f32.mrf.mxu0
      %v733 = vadd.f32 %v692, %v732
      %734 = vdwg.mxu0
      %v735 = vmax.f32 %v630, 0.0
      %v736 = vmax.f32 %v712, 0.0
      %v737 = vmax.f32 %v633, 0.0
      %v738 = vmax.f32 %v715, 0.0
      %v739 = vmax.f32 %v636, 0.0
      %v740 = vmax.f32 %v718, 0.0
      %v741 = vmax.f32 %v639, 0.0
      %v742 = vmax.f32 %v721, 0.0
      %v743 = vmax.f32 %v642, 0.0
      %v744 = vmax.f32 %v724, 0.0
      %v745 = vmax.f32 %v645, 0.0
      %v746 = vmax.f32 %v727, 0.0
      %v747 = vmax.f32 %v648, 0.0
      %v748 = vmax.f32 %v730, 0.0
      %v749 = vmax.f32 %v651, 0.0
      %v750 = vmax.f32 %v733, 0.0
      %v751 = vld [vmem:[%s5] sm:$0xff]
      %v752 = vld [vmem:[%s5 + $0x8] sm:$0xff]
      %v753 = vld [vmem:[%s5 + $0x10] sm:$0xff]
      %v754 = vld [vmem:[%s5 + $0x18] sm:$0xff]
      %v755 = vld [vmem:[%s5 + $0x20] sm:$0xff]
      %v756 = vld [vmem:[%s5 + $0x28] sm:$0xff]
      %v757 = vld [vmem:[%s5 + $0x30] sm:$0xff]
      %v758 = vld [vmem:[%s5 + $0x38] sm:$0xff]
      %v759 = vld [vmem:[%s5 + $0x40] sm:$0xff]
      %v760 = vld [vmem:[%s5 + $0x48] sm:$0xff]
      %v761 = vld [vmem:[%s5 + $0x50] sm:$0xff]
      %v762 = vld [vmem:[%s5 + $0x58] sm:$0xff]
      %v763 = vld [vmem:[%s5 + $0x60] sm:$0xff]
      %v764 = vld [vmem:[%s5 + $0x68] sm:$0xff]
      %v765 = vld [vmem:[%s5 + $0x70] sm:$0xff]
      %v766 = vld [vmem:[%s5 + $0x78] sm:$0xff]
      %v767 = vld [vmem:[%s5 + $0x80] sm:$0xff]
      %v768 = vld [vmem:[%s5 + $0x88] sm:$0xff]
      %v769 = vld [vmem:[%s5 + $0x90] sm:$0xff]
      %v770 = vld [vmem:[%s5 + $0x98] sm:$0xff]
      %v771 = vld [vmem:[%s6] sm:$0x1]
      %v773 = vperm.slane %v771, 0
      %vm775 = vcmask 261120
      %v777 = vsel %vm775, %v736, 0
      %v780 = vsel %vm775, %v738, 0
      %v783 = vsel %vm775, %v740, 0
      %v786 = vsel %vm775, %v742, 0
      %v789 = vsel %vm775, %v744, 0
      %v792 = vsel %vm775, %v746, 0
      %v795 = vsel %vm775, %v748, 0
      %v798 = vsel %vm775, %v750, 0
      %800 = vmatpush.msra.mxu0 %v766
      %801 = vmatpush.msra.mxu0 %v765
      %802 = vmatpush.msra.mxu0 %v764
      %803 = vmatpush.msra.mxu0 %v763
      %804 = vmatpush.msra.mxu0 %v762
      %805 = vmatpush.msra.mxu0 %v761
      %806 = vmatpush.msra.mxu0 %v760
      %807 = vmatpush.msra.mxu0 %v759
      %808 = vmatpush.msra.mxu0 %v758
      %809 = vmatpush.msra.mxu0 %v757
      %810 = vmatpush.msra.mxu0 %v756
      %811 = vmatpush.msra.mxu0 %v755
      %812 = vmatpush.msra.mxu0 %v754
      %813 = vmatpush.msra.mxu0 %v753
      %814 = vmatpush.msra.mxu0 %v752
      %815 = vmatpush.msra.mxu0 %v751
      %816 = vmatmul.f32.gmra.mxu0 %v735
      %v817 = vpop.f32.mrf.mxu0
      %v818 = vadd.f32 %v773, %v817
      %819 = vmatmul.f32.gmra.mxu0 %v737
      %v820 = vpop.f32.mrf.mxu0
      %v821 = vadd.f32 %v773, %v820
      %822 = vmatmul.f32.gmra.mxu0 %v739
      %v823 = vpop.f32.mrf.mxu0
      %v824 = vadd.f32 %v773, %v823
      %825 = vmatmul.f32.gmra.mxu0 %v741
      %v826 = vpop.f32.mrf.mxu0
      %v827 = vadd.f32 %v773, %v826
      %828 = vmatmul.f32.gmra.mxu0 %v743
      %v829 = vpop.f32.mrf.mxu0
      %v830 = vadd.f32 %v773, %v829
      %831 = vmatmul.f32.gmra.mxu0 %v745
      %v832 = vpop.f32.mrf.mxu0
      %v833 = vadd.f32 %v773, %v832
      %834 = vmatmul.f32.gmra.mxu0 %v747
      %v835 = vpop.f32.mrf.mxu0
      %v836 = vadd.f32 %v773, %v835
      %837 = vmatmul.f32.gmra.mxu0 %v749
      %v838 = vpop.f32.mrf.mxu0
      %v839 = vadd.f32 %v773, %v838
      %840 = vdwg.mxu0
      %841 = vmatpush.msra.mxu0 0.0
      %842 = vmatpush.msra.mxu0 0.0
      %843 = vmatpush.msra.mxu0 0.0
      %844 = vmatpush.msra.mxu0 0.0
      %845 = vmatpush.msra.mxu0 0.0
      %846 = vmatpush.msra.mxu0 0.0
      %847 = vmatpush.msra.mxu0 0.0
      %848 = vmatpush.msra.mxu0 0.0
      %849 = vmatpush.msra.mxu0 0.0
      %850 = vmatpush.msra.mxu0 0.0
      %851 = vmatpush.msra.mxu0 0.0
      %852 = vmatpush.msra.mxu0 0.0
      %853 = vmatpush.msra.mxu0 %v770
      %854 = vmatpush.msra.mxu0 %v769
      %855 = vmatpush.msra.mxu0 %v768
      %856 = vmatpush.msra.mxu0 %v767
      %857 = vmatmul.f32.gmra.mxu0 %v777
      %v858 = vpop.f32.mrf.mxu0
      %v859 = vadd.f32 %v818, %v858
      %860 = vmatmul.f32.gmra.mxu0 %v780
      %v861 = vpop.f32.mrf.mxu0
      %v862 = vadd.f32 %v821, %v861
      %863 = vmatmul.f32.gmra.mxu0 %v783
      %v864 = vpop.f32.mrf.mxu0
      %v865 = vadd.f32 %v824, %v864
      %866 = vmatmul.f32.gmra.mxu0 %v786
      %v867 = vpop.f32.mrf.mxu0
      %v868 = vadd.f32 %v827, %v867
      %869 = vmatmul.f32.gmra.mxu0 %v789
      %v870 = vpop.f32.mrf.mxu0
      %v871 = vadd.f32 %v830, %v870
      %872 = vmatmul.f32.gmra.mxu0 %v792
      %v873 = vpop.f32.mrf.mxu0
      %v874 = vadd.f32 %v833, %v873
      %875 = vmatmul.f32.gmra.mxu0 %v795
      %v876 = vpop.f32.mrf.mxu0
      %v877 = vadd.f32 %v836, %v876
      %878 = vmatmul.f32.gmra.mxu0 %v798
      %v879 = vpop.f32.mrf.mxu0
      %v880 = vadd.f32 %v839, %v879
      %881 = vdwg.mxu0
      %v882 = vmax.f32 %v859, 0.0
      %v883 = vmax.f32 %v862, 0.0
      %v884 = vmax.f32 %v865, 0.0
      %v885 = vmax.f32 %v868, 0.0
      %v886 = vmax.f32 %v871, 0.0
      %v887 = vmax.f32 %v874, 0.0
      %v888 = vmax.f32 %v877, 0.0
      %v889 = vmax.f32 %v880, 0.0
      %v890 = vld [vmem:[%s7] sm:$0xff]
      %v891 = vld [vmem:[%s7 + $0x8] sm:$0xff]
      %v892 = vld [vmem:[%s7 + $0x10] sm:$0xff]
      %v893 = vld [vmem:[%s7 + $0x18] sm:$0xff]
      %v894 = vld [vmem:[%s7 + $0x20] sm:$0xff]
      %v895 = vld [vmem:[%s7 + $0x28] sm:$0xff]
      %v896 = vld [vmem:[%s7 + $0x30] sm:$0xff]
      %v897 = vld [vmem:[%s7 + $0x38] sm:$0xff]
      %v898 = vld [vmem:[%s7 + $0x40] sm:$0xff]
      %v899 = vld [vmem:[%s7 + $0x48] sm:$0xff]
      %v900 = vld [vmem:[%s8] sm:$0x1]
      %v902 = vperm.slane %v900, 0
      %vm904 = vcmask 654336
      %v906 = vsel %vm904, %v882, 0
      %v909 = vsel %vm904, %v883, 0
      %v912 = vsel %vm904, %v884, 0
      %v915 = vsel %vm904, %v885, 0
      %v918 = vsel %vm904, %v886, 0
      %v921 = vsel %vm904, %v887, 0
      %v924 = vsel %vm904, %v888, 0
      %v927 = vsel %vm904, %v889, 0
      %929 = vmatpush.msra.mxu0 0.0
      %930 = vmatpush.msra.mxu0 0.0
      %931 = vmatpush.msra.mxu0 0.0
      %932 = vmatpush.msra.mxu0 0.0
      %933 = vmatpush.msra.mxu0 0.0
      %934 = vmatpush.msra.mxu0 0.0
      %935 = vmatpush.msra.mxu0 %v899
      %936 = vmatpush.msra.mxu0 %v898
      %937 = vmatpush.msra.mxu0 %v897
      %938 = vmatpush.msra.mxu0 %v896
      %939 = vmatpush.msra.mxu0 %v895
      %940 = vmatpush.msra.mxu0 %v894
      %941 = vmatpush.msra.mxu0 %v893
      %942 = vmatpush.msra.mxu0 %v892
      %943 = vmatpush.msra.mxu0 %v891
      %944 = vmatpush.msra.mxu0 %v890
      %945 = vmatmul.f32.gmra.mxu0 %v906
      %v946 = vpop.f32.mrf.mxu0
      %v947 = vadd.f32 %v902, %v946
      %948 = vmatmul.f32.gmra.mxu0 %v909
      %v949 = vpop.f32.mrf.mxu0
      %v950 = vadd.f32 %v902, %v949
      %951 = vmatmul.f32.gmra.mxu0 %v912
      %v952 = vpop.f32.mrf.mxu0
      %v953 = vadd.f32 %v902, %v952
      %954 = vmatmul.f32.gmra.mxu0 %v915
      %v955 = vpop.f32.mrf.mxu0
      %v956 = vadd.f32 %v902, %v955
      %957 = vmatmul.f32.gmra.mxu0 %v918
      %v958 = vpop.f32.mrf.mxu0
      %v959 = vadd.f32 %v902, %v958
      %960 = vmatmul.f32.gmra.mxu0 %v921
      %v961 = vpop.f32.mrf.mxu0
      %v962 = vadd.f32 %v902, %v961
      %963 = vmatmul.f32.gmra.mxu0 %v924
      %v964 = vpop.f32.mrf.mxu0
      %v965 = vadd.f32 %v902, %v964
      %966 = vmatmul.f32.gmra.mxu0 %v927
      %v967 = vpop.f32.mrf.mxu0
      %v968 = vadd.f32 %v902, %v967
      %969 = vdwg.mxu0
      %vm970 = vcmask 64512
      %971 = vst.msk [vmem:[%s334] sm:$0xff] %vm970, %v947
      %972 = vst.msk [vmem:[%s334 + $0x8] sm:$0xff] %vm970, %v950
      %973 = vst.msk [vmem:[%s334 + $0x10] sm:$0xff] %vm970, %v953
      %974 = vst.msk [vmem:[%s334 + $0x18] sm:$0xff] %vm970, %v956
      %975 = vst.msk [vmem:[%s334 + $0x20] sm:$0xff] %vm970, %v959
      %976 = vst.msk [vmem:[%s334 + $0x28] sm:$0xff] %vm970, %v962
      %977 = vst.msk [vmem:[%s334 + $0x30] sm:$0xff] %vm970, %v965
      %978 = vst.msk [vmem:[%s334 + $0x38] sm:$0xff] %vm970, %v968
      %s979 = smul.u32 8, %s20
      %p980 = scmp.lt.s32.totalorder %s979, 15
      %s981 = scalar_select %p980, %s979, 15
      %s982 = smul.addr %s981, 8
      %s983 = scalar_lea.vmem %s9, %s982
      // Predicated region
      $region57: #{tpu_custom_call.1} parent=55 // pred_check
        %p984 = pneg %p232
      $region58: #{tpu_custom_call.1} parent=55 // pred_check_branch
        %986 = sbr.rel (%p984) target = $region60
      $region59: #{tpu_custom_call.1} parent=55 // pred_region
        %s987 = smul.u32 8, %s20
      $region60: #{tpu_custom_call.1} parent=55 // pred_fallthru
        _
    $region56: #{tpu_custom_call.1} parent=5 // pred_fallthru
      _
    %p988 = scmp.le.s32.totalorder 2, %s15
    // Predicated region
    $region61: #{tpu_custom_call.1} parent=5 // pred_check
      %p989 = pneg %p988
    $region62: #{tpu_custom_call.1} parent=5 // pred_check_branch
      %991 = sbr.rel (%p989) target = $region64
    $region63: #{tpu_custom_call.1} parent=5 // pred_region
      %s992 = ssub.s32 %s15, 2
      // Predicated region
      $region65: #{tpu_custom_call.1} parent=63 // pred_check
        %p993 = pneg %p238
      $region66: #{tpu_custom_call.1} parent=63 // pred_check_branch
        %995 = sbr.rel (%p993) target = $region68
      $region67: #{tpu_custom_call.1} parent=63 // pred_region
        %s996 = smul.u32 8, %s21
        %p997 = scmp.lt.s32.totalorder %s996, 15
        %s998 = scalar_select %p997, %s996, 15
        %s999 = smul.addr %s998, 8
        %s1000 = scalar_lea.vmem %s9, %s999
      $region68: #{tpu_custom_call.1} parent=63 // pred_fallthru
        _
    $region64: #{tpu_custom_call.1} parent=5 // pred_fallthru
      _
  $region6: #{tpu_custom_call.1} parent=0 // loop_footer
    %s19 = sadd.s32 1, %s15
  $region7: #{tpu_custom_call.1} parent=0 // loop_footer_branch
    %14 = sbr.rel target = $region3
  $region8: #{tpu_custom_call.1} parent=0 // loop_exit
    _

</llo_original>
